<compile_context>
chip_gen: v5e
topology: v5e:2x2
jax: 0.10.0
libtpu: 0.0.40
codegen_flags: <defaults>
</compile_context>

<pallas_src>
import functools

import jax
import jax.numpy as jnp
from jax.experimental import pallas as pl
from jax.experimental.pallas import tpu as pltpu


# ----------------------------- in-kernel noise -----------------------------

def _uniform_pm_half(seed_i32, row0, salt, shape):
    """U(-1/2, 1/2) from a counter-based hash.

    Depends only on (seed, absolute row index, column, salt) -> grid/tile-size
    invariant, and uses only jnp integer ops (lowers on Mosaic and interpret).
    """
    r = (jax.lax.broadcasted_iota(jnp.int32, shape, 0) + row0).astype(jnp.uint32)
    c = jax.lax.broadcasted_iota(jnp.int32, shape, 1).astype(jnp.uint32)
    x = seed_i32.astype(jnp.uint32) ^ jnp.uint32(salt)
    x = x + r * jnp.uint32(0x9E3779B1) + c * jnp.uint32(0x85EBCA77)
    # murmur3-style finalizer
    x = x ^ (x >> 16)
    x = x * jnp.uint32(0x7FEB352D)
    x = x ^ (x >> 15)
    x = x * jnp.uint32(0x846CA68B)
    x = x ^ (x >> 16)
    u24 = (x >> 8).astype(jnp.int32)                     # 24 random bits, >= 0
    return u24.astype(jnp.float32) * jnp.float32(1.0 / (1 << 24)) - jnp.float32(0.5)


# ----------------------------- fused Pallas kernel -----------------------------

def _fused_kernel(c_y, c_z, c4, out_pad,
                  seed_ref,                          # SMEM scalar-prefetch
                  x_ref, w_enc_ref, w_hpe_ref, w_tail_ref, b_ref,
                  out_ref):
    """Whole forward pass on one row-tile; writes one lane-dense bf16 slab.

    Output lane layout: [ y_tilde(c_y) | z_tilde(c_z) | x_rec(c4) | mean(c_y) | std(c_y) | pad ]
    """
    tm = x_ref.shape[0]
    seed = seed_ref[0]
    row0 = pl.program_id(0) * tm                      # absolute row of this tile

    # Packed bias: [b_enc | b_hpe | b_dec | b_hm | b_hs]   (f32, one tiny DMA)
    bias = b_ref[...]
    b_enc = bias[:, :c_y]
    b_hpe = bias[:, c_y:c_y + c_z]
    b_tail = bias[:, c_y + c_z:]                      # [b_dec | b_hm | b_hs]

    # encoder: y = x @ W_enc + b ; y_tilde = y + U(-1/2, 1/2)
    # (x / weights arrive pre-cast to bf16; accumulation + epilogue in f32)
    y = jnp.dot(x_ref[...], w_enc_ref[...],
                preferred_element_type=jnp.float32) + b_enc
    y_tilde = y + _uniform_pm_half(seed, row0, 0x1A2B3C4D, (tm, c_y))

    # hyperprior encoder on the pre-noise y (matches the torch module):
    z = jnp.dot(y.astype(jnp.bfloat16), w_hpe_ref[...],
                preferred_element_type=jnp.float32) + b_hpe
    z_tilde = z + _uniform_pm_half(seed, row0, 0x5E6F7A8B, (tm, c_z))

    # decoder + hyperprior decoder fused into one block-diagonal matmul:
    #   [y_tilde | z_tilde] @ W_tail = [x_rec | mean | std_pre]
    yz = jnp.concatenate([y_tilde, z_tilde], axis=-1)                 # (tm, c_y+c_z)
    tail = jnp.dot(yz.astype(jnp.bfloat16), w_tail_ref[...],
                   preferred_element_type=jnp.float32) + b_tail       # (tm, c4+2*c_y)

    # softplus(+1e-6 floor) on the std lanes only (exactly c_y lanes of EUP work).
    sp = tail[:, c4 + c_y:]
    std = jnp.maximum(sp, 0.0) + jnp.log(1.0 + jnp.exp(-jnp.abs(sp))) + 1e-6

    segs = [yz, tail[:, :c4 + c_y], std]
    if out_pad:
        segs.append(jnp.zeros((tm, out_pad), jnp.float32))
    out_ref[...] = jnp.concatenate(segs, axis=-1).astype(out_ref.dtype)


# ----------------------------- tiling / pallas_call wrapper -----------------------------

def _tile_budget():
    """(row-tile cap, vmem_limit_bytes) derived from this generation's VMEM."""
    try:
        vmem = int(pltpu.get_tpu_info().vmem_capacity_bytes)
    except Exception:
        vmem = 64 << 20                      # conservative default (v7x per-TC)
    if vmem >= (96 << 20):                   # v5e / v6e: 128 MiB physical
        return 8192, 96 << 20
    return 4096, 48 << 20                    # v7x: 64 MiB physical


def _pick_tm(rows, cap):
    """Largest power-of-two row tile <= cap, but keep >=2 grid tiles when
    possible so v7x's second TensorCore is not idle."""
    tm = min(cap, pl.next_power_of_2(max(int(rows), 8)))
    while tm > 8 and pl.cdiv(rows, tm) < 2:
        tm //= 2
    return tm


def _fused_call(x_s2d, w_enc, w_hpe, w_tail, b_packed, seed_arr,
                *, c_y, c_z, c4):
    rows = x_s2d.shape[0]
    out_w = c_y + c_z + c4 + 2 * c_y
    out_w_p = ((out_w + 127) // 128) * 128            # keep HBM stores lane-dense

    cap, vmem_limit = _tile_budget()
    tm = _pick_tm(rows, cap)
    rows_p = tm * pl.cdiv(rows, tm)
    if rows_p != rows:                                 # pad ragged row counts
        x_s2d = jnp.pad(x_s2d, ((0, rows_p - rows), (0, 0)))
    grid = (rows_p // tm,)

    kernel = functools.partial(_fused_kernel, c_y, c_z, c4, out_w_p - out_w)

    grid_spec = pltpu.PrefetchScalarGridSpec(
        num_scalar_prefetch=1,                         # the PRNG seed (SMEM)
        grid=grid,
        in_specs=[
            pl.BlockSpec((tm, c4), lambda i, seed: (i, 0)),          # x row tile (bf16)
            pl.BlockSpec(w_enc.shape, lambda i, seed: (0, 0)),
            pl.BlockSpec(w_hpe.shape, lambda i, seed: (0, 0)),
            pl.BlockSpec(w_tail.shape, lambda i, seed: (0, 0)),
            pl.BlockSpec(b_packed.shape, lambda i, seed: (0, 0)),
        ],
        out_specs=pl.BlockSpec((tm, out_w_p), lambda i, seed: (i, 0)),
    )

    out = pl.pallas_call(
        kernel,
        out_shape=jax.ShapeDtypeStruct((rows_p, out_w_p), jnp.bfloat16),
        grid_spec=grid_spec,
        compiler_params=pltpu.CompilerParams(
            dimension_semantics=("parallel",),
            vmem_limit_bytes=vmem_limit),
    )(seed_arr, x_s2d, w_enc, w_hpe, w_tail, b_packed)

    return out[:rows, :out_w]


# ----------------------------- parameter init -----------------------------

def _xavier_uniform(key, shape):
    fan_in, fan_out = shape[-2], shape[-1]
    bound = (6.0 / (fan_in + fan_out)) ** 0.5
    return jax.random.uniform(key, shape, jnp.float32, -bound, bound)


def init_params(key, c_in=4, c_y=32, c_z=16, hy=8, wy=8):
    ks = jax.random.split(key, 8)
    c4 = 4 * c_in
    w_enc = _xavier_uniform(ks[0], (c4, c_y))     # 2x2-stride conv == s2d + matmul
    w_hpe = _xavier_uniform(ks[1], (c_y, c_z))    # hyperprior encoder (1x1 conv)
    w_hm = _xavier_uniform(ks[2], (c_z, c_y))     # hyperprior decoder: mean head
    w_hs = _xavier_uniform(ks[3], (c_z, c_y))     # hyperprior decoder: std head
    w_dec = _xavier_uniform(ks[4], (c_y, c4))     # decoder (1x1 conv) + d2s upsample

    # Block-diagonal fused tail: [y_tilde | z_tilde] @ W_tail = [x_rec | mean | std_pre]
    w_tail = jnp.zeros((c_y + c_z, c4 + 2 * c_y), jnp.float32)
    w_tail = w_tail.at[:c_y, :c4].set(w_dec)
    w_tail = w_tail.at[c_y:, c4:c4 + c_y].set(w_hm)
    w_tail = w_tail.at[c_y:, c4 + c_y:].set(w_hs)

    return {
        # matmul operands stored pre-cast to bf16 (f32 accumulation in-kernel)
        "W_enc": w_enc.astype(jnp.bfloat16),
        "W_hpe": w_hpe.astype(jnp.bfloat16),
        "W_tail": w_tail.astype(jnp.bfloat16),
        # packed biases: [b_enc(c_y) | b_hpe(c_z) | b_dec(c4) | b_hm(c_y) | b_hs(c_y)]
        "b_packed": jnp.zeros((1, c_y + c_z + c4 + 2 * c_y), jnp.float32),
        # nn.Parameter analogues (only used by side_info_rate, not forward)
        "hyperprior_mean": _xavier_uniform(ks[5], (1, c_z, hy, wy)),
        "hyperprior_std_deviation": _xavier_uniform(ks[6], (1, c_z, hy, wy)),
    }


# ----------------------------- forward -----------------------------

@functools.partial(jax.jit, static_argnames=("c_y", "c_z"))
def training_module_forward(params, x, seed, c_y=32, c_z=16):
    """Mirrors TrainingModule.forward.

    x: NCHW float32 (B, C, H, W); seed: int32 scalar for the in-kernel noise.
    returns (x_tilde, y_tilde, z_tilde, hyperprior_mean, hyperprior_std_deviation)
    in NCHW, matching torch conventions.
    """
    b, c, h, w = x.shape
    hy, wy = h // 2, w // 2
    rows = b * hy * wy
    c4 = 4 * c

    # NCHW -> NHWC -> space-to-depth (2x2) -> (rows, 4*C), pre-cast to bf16.
    # TODO(synk): accept NHWC / pre-s2d 2-D input at the module boundary and
    # return the packed 2-D slab to the loss; these transposes are full HBM
    # passes around the kernel.
    x_nhwc = jnp.transpose(x, (0, 2, 3, 1))
    x_s2d = (x_nhwc.reshape(b, hy, 2, wy, 2, c)
             .transpose(0, 1, 3, 2, 4, 5)
             .reshape(rows, c4)).astype(jnp.bfloat16)

    seed_arr = jnp.reshape(jnp.asarray(seed, jnp.int32), (1,))

    packed = _fused_call(x_s2d, params["W_enc"], params["W_hpe"],
                         params["W_tail"], params["b_packed"], seed_arr,
                         c_y=c_y, c_z=c_z, c4=c4)

    # Split the lane-dense slab: [y_tilde | z_tilde | x_rec | mean | std]
    o = 0
    y_tilde = packed[:, o:o + c_y].astype(jnp.float32); o += c_y
    z_tilde = packed[:, o:o + c_z].astype(jnp.float32); o += c_z
    xt_2d = packed[:, o:o + c4].astype(jnp.float32);    o += c4
    hp_mean = packed[:, o:o + c_y].astype(jnp.float32); o += c_y
    hp_std = packed[:, o:o + c_y].astype(jnp.float32)

    # decoder epilogue: depth-to-space (2x2 upsample) + back to NCHW
    x_tilde = (xt_2d.reshape(b, hy, wy, 2, 2, c)
               .transpose(0, 1, 3, 2, 4, 5)
               .reshape(b, h, w, c))
    x_tilde = jnp.transpose(x_tilde, (0, 3, 1, 2))

    def to_nchw(a2d, ch):
        return jnp.transpose(a2d.reshape(b, hy, wy, ch), (0, 3, 1, 2))

    return (x_tilde,
            to_nchw(y_tilde, c_y),
            to_nchw(z_tilde, c_z),
            to_nchw(hp_mean, c_y),
            to_nchw(hp_std, c_y))


# TODO(synk): encoder/decoder/hyperprior submodules are abstract nn.Modules in
# the original; they are instantiated here as minimal strided-conv
# (space-to-depth + channel matmul) analogues since no architecture is given.

if __name__ == "__main__":
    key = jax.random.PRNGKey(0)
    k_param, k_x = jax.random.split(key, 2)

    B, C, H, W = 2, 4, 16, 16
    C_Y, C_Z = 32, 16

    params = init_params(k_param, c_in=C, c_y=C_Y, c_z=C_Z, hy=H // 2, wy=W // 2)
    x = jax.random.normal(k_x, (B, C, H, W), jnp.float32)

    outs = training_module_forward(params, x, 0, c_y=C_Y, c_z=C_Z)
    outs = jax.block_until_ready(outs)

    x_tilde, y_tilde, z_tilde, hp_mean, hp_std = outs
    assert x_tilde.shape == (B, C, H, W)
    assert y_tilde.shape == (B, C_Y, H // 2, W // 2)
    assert z_tilde.shape == (B, C_Z, H // 2, W // 2)
    assert hp_mean.shape == (B, C_Y, H // 2, W // 2)
    assert hp_std.shape == (B, C_Y, H // 2, W // 2)
    assert bool(jnp.all(hp_std > 0))
    assert all(bool(jnp.all(jnp.isfinite(o))) for o in outs)
    assert bool(jnp.all(jnp.abs(y_tilde) < 1e4))

    print("KERNEL_OK")
</pallas_src>

<mosaic_0001>
module attributes {stable_mosaic.version = 11 : i64} {
  func.func @_fused_kernel(%arg0: i32, %arg1: memref<1xi32, #tpu.memory_space<smem>>, %arg2: memref<64x16xbf16, #tpu.memory_space<vmem>>, %arg3: memref<16x32xbf16, #tpu.memory_space<vmem>>, %arg4: memref<32x16xbf16, #tpu.memory_space<vmem>>, %arg5: memref<48x80xbf16, #tpu.memory_space<vmem>>, %arg6: memref<1x128xf32, #tpu.memory_space<vmem>>, %arg7: memref<64x128xbf16, #tpu.memory_space<vmem>>) attributes {dimension_semantics = [#tpu.dimension_semantics<parallel>], iteration_bounds = array<i64: 2>, scalar_prefetch = 1 : i64, scratch_operands = 0 : i64, tpu.core_type = #tpu.core_type<tc>, window_params = [{transform_indices = @transform_0, window_bounds = array<i64: 64, 16>}, {pipeline_mode = #tpu.pipeline_mode<synchronous>, transform_indices = @transform_1, window_bounds = array<i64: 16, 32>}, {pipeline_mode = #tpu.pipeline_mode<synchronous>, transform_indices = @transform_2, window_bounds = array<i64: 32, 16>}, {pipeline_mode = #tpu.pipeline_mode<synchronous>, transform_indices = @transform_3, window_bounds = array<i64: 48, 80>}, {pipeline_mode = #tpu.pipeline_mode<synchronous>, transform_indices = @transform_4, window_bounds = array<i64: 1, 128>}, {transform_indices = @transform_5, window_bounds = array<i64: 64, 128>}]} {
    %c0 = arith.constant 0 : index
    %0 = memref.load %arg1[%c0] : memref<1xi32, #tpu.memory_space<smem>>
    %c64_i32 = arith.constant 64 : i32
    %1 = arith.muli %arg0, %c64_i32 : i32
    %c0_0 = arith.constant 0 : index
    %c0_1 = arith.constant 0 : index
    %2 = vector.load %arg6[%c0_0, %c0_1] : memref<1x128xf32, #tpu.memory_space<vmem>>, vector<1x128xf32>
    %3 = vector.extract_strided_slice %2 {offsets = [0, 0], sizes = [1, 32], strides = [1, 1]} : vector<1x128xf32> to vector<1x32xf32>
    %4 = vector.extract_strided_slice %2 {offsets = [0, 32], sizes = [1, 16], strides = [1, 1]} : vector<1x128xf32> to vector<1x16xf32>
    %5 = vector.extract_strided_slice %2 {offsets = [0, 48], sizes = [1, 80], strides = [1, 1]} : vector<1x128xf32> to vector<1x80xf32>
    %c0_2 = arith.constant 0 : index
    %c0_3 = arith.constant 0 : index
    %6 = vector.load %arg2[%c0_2, %c0_3] : memref<64x16xbf16, #tpu.memory_space<vmem>>, vector<64x16xbf16>
    %c0_4 = arith.constant 0 : index
    %c0_5 = arith.constant 0 : index
    %7 = vector.load %arg3[%c0_4, %c0_5] : memref<16x32xbf16, #tpu.memory_space<vmem>>, vector<16x32xbf16>
    %cst = arith.constant dense<0.000000e+00> : vector<64x32xf32>
    %8 = tpu.matmul %6, %7, %cst {dimension_numbers = #tpu.dot_dimension_numbers<[1], [0], [0], [1], [0, 0, 1, 1], [], []>} : vector<64x16xbf16>, vector<16x32xbf16>, vector<64x32xf32> -> vector<64x32xf32>
    %9 = vector.broadcast %3 : vector<1x32xf32> to vector<64x32xf32>
    %10 = arith.addf %8, %9 : vector<64x32xf32>
    %11 = tpu.iota {dimensions = array<i32: 0>} : vector<64x32xi32>
    %12 = vector.broadcast %1 : i32 to vector<64x32xi32>
    %13 = arith.addi %11, %12 : vector<64x32xi32>
    %14 = tpu.iota {dimensions = array<i32: 1>} : vector<64x32xi32>
    %c439041101_i32 = arith.constant 439041101 : i32
    %15 = arith.xori %0, %c439041101_i32 : i32
    %c-1640531535_i32 = arith.constant -1640531535 : i32
    %16 = vector.broadcast %c-1640531535_i32 : i32 to vector<64x32xi32>
    %17 = arith.muli %13, %16 : vector<64x32xi32>
    %18 = vector.broadcast %15 : i32 to vector<64x32xi32>
    %19 = arith.addi %18, %17 : vector<64x32xi32>
    %c-2048144777_i32 = arith.constant -2048144777 : i32
    %20 = vector.broadcast %c-2048144777_i32 : i32 to vector<64x32xi32>
    %21 = arith.muli %14, %20 : vector<64x32xi32>
    %22 = arith.addi %19, %21 : vector<64x32xi32>
    %c16_i32 = arith.constant 16 : i32
    %23 = vector.broadcast %c16_i32 : i32 to vector<64x32xi32>
    %24 = arith.shrui %22, %23 : vector<64x32xi32>
    %25 = arith.xori %22, %24 : vector<64x32xi32>
    %c2146121005_i32 = arith.constant 2146121005 : i32
    %26 = vector.broadcast %c2146121005_i32 : i32 to vector<64x32xi32>
    %27 = arith.muli %25, %26 : vector<64x32xi32>
    %c15_i32 = arith.constant 15 : i32
    %28 = vector.broadcast %c15_i32 : i32 to vector<64x32xi32>
    %29 = arith.shrui %27, %28 : vector<64x32xi32>
    %30 = arith.xori %27, %29 : vector<64x32xi32>
    %c-2073254261_i32 = arith.constant -2073254261 : i32
    %31 = vector.broadcast %c-2073254261_i32 : i32 to vector<64x32xi32>
    %32 = arith.muli %30, %31 : vector<64x32xi32>
    %c16_i32_6 = arith.constant 16 : i32
    %33 = vector.broadcast %c16_i32_6 : i32 to vector<64x32xi32>
    %34 = arith.shrui %32, %33 : vector<64x32xi32>
    %35 = arith.xori %32, %34 : vector<64x32xi32>
    %c8_i32 = arith.constant 8 : i32
    %36 = vector.broadcast %c8_i32 : i32 to vector<64x32xi32>
    %37 = arith.shrui %35, %36 : vector<64x32xi32>
    %38 = arith.sitofp %37 : vector<64x32xi32> to vector<64x32xf32>
    %cst_7 = arith.constant 5.96046448E-8 : f32
    %39 = vector.broadcast %cst_7 : f32 to vector<64x32xf32>
    %40 = arith.mulf %38, %39 : vector<64x32xf32>
    %cst_8 = arith.constant 5.000000e-01 : f32
    %41 = vector.broadcast %cst_8 : f32 to vector<64x32xf32>
    %42 = arith.subf %40, %41 : vector<64x32xf32>
    %43 = arith.addf %10, %42 : vector<64x32xf32>
    %44 = arith.truncf %10 : vector<64x32xf32> to vector<64x32xbf16>
    %c0_9 = arith.constant 0 : index
    %c0_10 = arith.constant 0 : index
    %45 = vector.load %arg4[%c0_9, %c0_10] : memref<32x16xbf16, #tpu.memory_space<vmem>>, vector<32x16xbf16>
    %cst_11 = arith.constant dense<0.000000e+00> : vector<64x16xf32>
    %46 = tpu.matmul %44, %45, %cst_11 {dimension_numbers = #tpu.dot_dimension_numbers<[1], [0], [0], [1], [0, 0, 1, 1], [], []>} : vector<64x32xbf16>, vector<32x16xbf16>, vector<64x16xf32> -> vector<64x16xf32>
    %47 = vector.broadcast %4 : vector<1x16xf32> to vector<64x16xf32>
    %48 = arith.addf %46, %47 : vector<64x16xf32>
    %49 = tpu.iota {dimensions = array<i32: 0>} : vector<64x16xi32>
    %50 = vector.broadcast %1 : i32 to vector<64x16xi32>
    %51 = arith.addi %49, %50 : vector<64x16xi32>
    %52 = tpu.iota {dimensions = array<i32: 1>} : vector<64x16xi32>
    %c1584364171_i32 = arith.constant 1584364171 : i32
    %53 = arith.xori %0, %c1584364171_i32 : i32
    %c-1640531535_i32_12 = arith.constant -1640531535 : i32
    %54 = vector.broadcast %c-1640531535_i32_12 : i32 to vector<64x16xi32>
    %55 = arith.muli %51, %54 : vector<64x16xi32>
    %56 = vector.broadcast %53 : i32 to vector<64x16xi32>
    %57 = arith.addi %56, %55 : vector<64x16xi32>
    %c-2048144777_i32_13 = arith.constant -2048144777 : i32
    %58 = vector.broadcast %c-2048144777_i32_13 : i32 to vector<64x16xi32>
    %59 = arith.muli %52, %58 : vector<64x16xi32>
    %60 = arith.addi %57, %59 : vector<64x16xi32>
    %c16_i32_14 = arith.constant 16 : i32
    %61 = vector.broadcast %c16_i32_14 : i32 to vector<64x16xi32>
    %62 = arith.shrui %60, %61 : vector<64x16xi32>
    %63 = arith.xori %60, %62 : vector<64x16xi32>
    %c2146121005_i32_15 = arith.constant 2146121005 : i32
    %64 = vector.broadcast %c2146121005_i32_15 : i32 to vector<64x16xi32>
    %65 = arith.muli %63, %64 : vector<64x16xi32>
    %c15_i32_16 = arith.constant 15 : i32
    %66 = vector.broadcast %c15_i32_16 : i32 to vector<64x16xi32>
    %67 = arith.shrui %65, %66 : vector<64x16xi32>
    %68 = arith.xori %65, %67 : vector<64x16xi32>
    %c-2073254261_i32_17 = arith.constant -2073254261 : i32
    %69 = vector.broadcast %c-2073254261_i32_17 : i32 to vector<64x16xi32>
    %70 = arith.muli %68, %69 : vector<64x16xi32>
    %c16_i32_18 = arith.constant 16 : i32
    %71 = vector.broadcast %c16_i32_18 : i32 to vector<64x16xi32>
    %72 = arith.shrui %70, %71 : vector<64x16xi32>
    %73 = arith.xori %70, %72 : vector<64x16xi32>
    %c8_i32_19 = arith.constant 8 : i32
    %74 = vector.broadcast %c8_i32_19 : i32 to vector<64x16xi32>
    %75 = arith.shrui %73, %74 : vector<64x16xi32>
    %76 = arith.sitofp %75 : vector<64x16xi32> to vector<64x16xf32>
    %cst_20 = arith.constant 5.96046448E-8 : f32
    %77 = vector.broadcast %cst_20 : f32 to vector<64x16xf32>
    %78 = arith.mulf %76, %77 : vector<64x16xf32>
    %cst_21 = arith.constant 5.000000e-01 : f32
    %79 = vector.broadcast %cst_21 : f32 to vector<64x16xf32>
    %80 = arith.subf %78, %79 : vector<64x16xf32>
    %81 = arith.addf %48, %80 : vector<64x16xf32>
    %82 = tpu.concatenate %43, %81 in 1 : vector<64x32xf32>, vector<64x16xf32> -> vector<64x48xf32>
    %83 = arith.truncf %82 : vector<64x48xf32> to vector<64x48xbf16>
    %c0_22 = arith.constant 0 : index
    %c0_23 = arith.constant 0 : index
    %84 = vector.load %arg5[%c0_22, %c0_23] : memref<48x80xbf16, #tpu.memory_space<vmem>>, vector<48x80xbf16>
    %cst_24 = arith.constant dense<0.000000e+00> : vector<64x80xf32>
    %85 = tpu.matmul %83, %84, %cst_24 {dimension_numbers = #tpu.dot_dimension_numbers<[1], [0], [0], [1], [0, 0, 1, 1], [], []>} : vector<64x48xbf16>, vector<48x80xbf16>, vector<64x80xf32> -> vector<64x80xf32>
    %86 = vector.broadcast %5 : vector<1x80xf32> to vector<64x80xf32>
    %87 = arith.addf %85, %86 : vector<64x80xf32>
    %88 = vector.extract_strided_slice %87 {offsets = [0, 48], sizes = [64, 32], strides = [1, 1]} : vector<64x80xf32> to vector<64x32xf32>
    %cst_25 = arith.constant 0.000000e+00 : f32
    %89 = vector.broadcast %cst_25 : f32 to vector<64x32xf32>
    %90 = arith.maximumf %88, %89 : vector<64x32xf32>
    %91 = math.absf %88 : vector<64x32xf32>
    %cst_26 = arith.constant 0.000000e+00 : f32
    %92 = vector.broadcast %cst_26 : f32 to vector<64x32xf32>
    %93 = arith.subf %92, %91 : vector<64x32xf32>
    %94 = math.exp %93 : vector<64x32xf32>
    %cst_27 = arith.constant 1.000000e+00 : f32
    %95 = vector.broadcast %cst_27 : f32 to vector<64x32xf32>
    %96 = arith.addf %95, %94 : vector<64x32xf32>
    %97 = math.log %96 : vector<64x32xf32>
    %98 = arith.addf %90, %97 : vector<64x32xf32>
    %cst_28 = arith.constant 9.99999997E-7 : f32
    %99 = vector.broadcast %cst_28 : f32 to vector<64x32xf32>
    %100 = arith.addf %98, %99 : vector<64x32xf32>
    %101 = vector.extract_strided_slice %87 {offsets = [0, 0], sizes = [64, 48], strides = [1, 1]} : vector<64x80xf32> to vector<64x48xf32>
    %102 = tpu.concatenate %82, %101, %100 in 1 : vector<64x48xf32>, vector<64x48xf32>, vector<64x32xf32> -> vector<64x128xf32>
    %103 = arith.truncf %102 : vector<64x128xf32> to vector<64x128xbf16>
    %c0_29 = arith.constant 0 : index
    %c0_30 = arith.constant 0 : index
    %104 = vector.load %arg7[%c0_29, %c0_30] : memref<64x128xbf16, #tpu.memory_space<vmem>>, vector<64x128xbf16>
    tpu.vector_store %arg7[%c0_29, %c0_30], %103 {strides = array<i32>} : memref<64x128xbf16, #tpu.memory_space<vmem>>, vector<64x128xbf16>,
    return
  }
  func.func @transform_0(%arg0: i32, %arg1: memref<1xi32, #tpu.memory_space<smem>>) -> (i32, i32) {
    %c0_i32 = arith.constant 0 : i32
    %c0_i32_0 = arith.constant 0 : i32
    return %arg0, %c0_i32 : i32, i32
  }
  func.func @transform_1(%arg0: i32, %arg1: memref<1xi32, #tpu.memory_space<smem>>) -> (i32, i32) {
    %c0_i32 = arith.constant 0 : i32
    %c0_i32_0 = arith.constant 0 : i32
    %c0_i32_1 = arith.constant 0 : i32
    return %c0_i32, %c0_i32_0 : i32, i32
  }
  func.func @transform_2(%arg0: i32, %arg1: memref<1xi32, #tpu.memory_space<smem>>) -> (i32, i32) {
    %c0_i32 = arith.constant 0 : i32
    %c0_i32_0 = arith.constant 0 : i32
    %c0_i32_1 = arith.constant 0 : i32
    return %c0_i32, %c0_i32_0 : i32, i32
  }
  func.func @transform_3(%arg0: i32, %arg1: memref<1xi32, #tpu.memory_space<smem>>) -> (i32, i32) {
    %c0_i32 = arith.constant 0 : i32
    %c0_i32_0 = arith.constant 0 : i32
    %c0_i32_1 = arith.constant 0 : i32
    return %c0_i32, %c0_i32_0 : i32, i32
  }
  func.func @transform_4(%arg0: i32, %arg1: memref<1xi32, #tpu.memory_space<smem>>) -> (i32, i32) {
    %c0_i32 = arith.constant 0 : i32
    %c0_i32_0 = arith.constant 0 : i32
    %c0_i32_1 = arith.constant 0 : i32
    return %c0_i32, %c0_i32_0 : i32, i32
  }
  func.func @transform_5(%arg0: i32, %arg1: memref<1xi32, #tpu.memory_space<smem>>) -> (i32, i32) {
    %c0_i32 = arith.constant 0 : i32
    %c0_i32_0 = arith.constant 0 : i32
    return %arg0, %c0_i32 : i32, i32
  }
}

</mosaic_0001>

<llo_original>
// kernel: training_module_forward.1
$region0: #{training_module_forward.1}
  #allocation0 [shape = 'u32[]', space=smem, size = 0x4, offset = 0x4, fixed_abs, tag = 'smem constant byte address 0x4 - core index']
  #allocation1 [shape = 'u32[72,128]{1,0:T(1,128)}', space=vmem, size = 0x9000, scoped, tag = 'internal scratch']
  #allocation2 [shape = 's32[1]{0}', space=sflag, size = 0x4, scoped, tag = 'scoped memory for training_module_forward.1']
  #allocation3 [shape = 's32[1]{0:T(128)S(6)}', space=smem, size = 0x200, scoped, tag = 'prefetched SMEM operand 0']
  %s0 = inlined_call_operand.<no memory space> [shape: s32[1], index: 0, kind: input, shape index: {}]
  %s1 = inlined_call_operand.vmem [shape: bf16[128,16], index: 1, kind: input, shape index: {}]
  %s2 = inlined_call_operand.vmem [shape: bf16[16,32], index: 2, kind: input, shape index: {}]
  %s3 = inlined_call_operand.vmem [shape: bf16[32,16], index: 3, kind: input, shape index: {}]
  %s4 = inlined_call_operand.vmem [shape: bf16[48,80], index: 4, kind: input, shape index: {}]
  %s5 = inlined_call_operand.vmem [shape: f32[1,128], index: 5, kind: input, shape index: {}]
  %s6 = inlined_call_operand.vmem [shape: bf16[128,128], index: 6, kind: output, shape index: {}]
  %s7 = sld [smem:[#allocation0]]
  $region53: #{training_module_forward.1} parent=0
    _
  %s9 = ssub.s32 1, %s7
  %s10 = scalar_select 0, %s9, %s7
  %11 = sst [smem:[#allocation3]] %s0
  loop: start=0, step=1, limit=4
  $region2: #{training_module_forward.1} parent=0 // loop_pre_header
    _
  $region3: #{training_module_forward.1} parent=0 // loop_header
    %s13 = sphi 0, %s17
    %p14 = scmp.ge.s32.totalorder %s13, 4
    %s23 = sphi 0, %s25
    %s26 = sphi 0, %s23
    %s27 = sphi 0, %s26
    %s43 = sphi 0, %s27
    %s47 = sphi 0, %s47
    %s49 = sphi 0, %s47
    %s50 = sphi 0, %s49
    %s64 = sphi 0, %s50
    %s68 = sphi 0, %s68
    %s70 = sphi 0, %s68
    %s71 = sphi 0, %s70
    %s85 = sphi 0, %s71
    %s89 = sphi 0, %s89
    %s91 = sphi 0, %s89
    %s92 = sphi 0, %s91
    %s106 = sphi 0, %s92
    %s110 = sphi 0, %s110
    %s112 = sphi 0, %s110
    %s113 = sphi 0, %s112
    %s127 = sphi 0, %s113
    %s133 = sphi 0, %s135
    %s136 = sphi 0, %s133
    %s137 = sphi 0, %s136
    %s153 = sphi 0, %s137
  $region4: #{training_module_forward.1} parent=0 // loop_header_branch
    %16 = sbr.rel (%p14) target = $region8
  $region5: #{training_module_forward.1} parent=0 // loop_body
    %s18 = ssub.s32 %s13, 1
    %s19 = ssub.s32 %s13, 2
    %s20 = sadd.s32 %s13, 1
    %s21 = ssub.s32 %s13, %s20
    %p22 = scmp.eq.s32.totalorder %s21, 0
    %s24 = sadd.s32 %s23, 1
    %s25 = scalar_select %p22, %s23, %s24
    %p28 = pneg %p22
    %p29 = scmp.eq.s32.totalorder %s13, 1
    %p30 = por %p28, %p29
    %p31 = scmp.ne.s32.totalorder %s23, %s26
    %p32 = scmp.eq.s32.totalorder %s13, 0
    %p33 = por %p31, %p32
    %p34 = scmp.ne.s32.totalorder %s23, %s26
    %p35 = scmp.eq.s32.totalorder %s18, 1
    %p36 = por %p34, %p35
    %p37 = scmp.ne.s32.totalorder %s26, %s27
    %p38 = scmp.eq.s32.totalorder %s18, 0
    %p39 = por %p37, %p38
    %p40 = scmp.ne.s32.totalorder %s26, %s27
    %p41 = scmp.eq.s32.totalorder %s19, 1
    %p42 = por %p40, %p41
    %p44 = scmp.ne.s32.totalorder %s27, %s43
    %p45 = scmp.eq.s32.totalorder %s19, 0
    %p46 = por %p44, %p45
    %s48 = sadd.s32 %s47, 1
    %p51 = scmp.eq.s32.totalorder %s13, 1
    %p52 = scmp.ne.s32.totalorder %s47, %s49
    %p53 = scmp.eq.s32.totalorder %s13, 0
    %p54 = por %p52, %p53
    %p55 = scmp.ne.s32.totalorder %s47, %s49
    %p56 = scmp.eq.s32.totalorder %s18, 1
    %p57 = por %p55, %p56
    %p58 = scmp.ne.s32.totalorder %s49, %s50
    %p59 = scmp.eq.s32.totalorder %s18, 0
    %p60 = por %p58, %p59
    %p61 = scmp.ne.s32.totalorder %s49, %s50
    %p62 = scmp.eq.s32.totalorder %s19, 1
    %p63 = por %p61, %p62
    %p65 = scmp.ne.s32.totalorder %s50, %s64
    %p66 = scmp.eq.s32.totalorder %s19, 0
    %p67 = por %p65, %p66
    %s69 = sadd.s32 %s68, 1
    %p72 = scmp.eq.s32.totalorder %s13, 1
    %p73 = scmp.ne.s32.totalorder %s68, %s70
    %p74 = scmp.eq.s32.totalorder %s13, 0
    %p75 = por %p73, %p74
    %p76 = scmp.ne.s32.totalorder %s68, %s70
    %p77 = scmp.eq.s32.totalorder %s18, 1
    %p78 = por %p76, %p77
    %p79 = scmp.ne.s32.totalorder %s70, %s71
    %p80 = scmp.eq.s32.totalorder %s18, 0
    %p81 = por %p79, %p80
    %p82 = scmp.ne.s32.totalorder %s70, %s71
    %p83 = scmp.eq.s32.totalorder %s19, 1
    %p84 = por %p82, %p83
    %p86 = scmp.ne.s32.totalorder %s71, %s85
    %p87 = scmp.eq.s32.totalorder %s19, 0
    %p88 = por %p86, %p87
    %s90 = sadd.s32 %s89, 1
    %p93 = scmp.eq.s32.totalorder %s13, 1
    %p94 = scmp.ne.s32.totalorder %s89, %s91
    %p95 = scmp.eq.s32.totalorder %s13, 0
    %p96 = por %p94, %p95
    %p97 = scmp.ne.s32.totalorder %s89, %s91
    %p98 = scmp.eq.s32.totalorder %s18, 1
    %p99 = por %p97, %p98
    %p100 = scmp.ne.s32.totalorder %s91, %s92
    %p101 = scmp.eq.s32.totalorder %s18, 0
    %p102 = por %p100, %p101
    %p103 = scmp.ne.s32.totalorder %s91, %s92
    %p104 = scmp.eq.s32.totalorder %s19, 1
    %p105 = por %p103, %p104
    %p107 = scmp.ne.s32.totalorder %s92, %s106
    %p108 = scmp.eq.s32.totalorder %s19, 0
    %p109 = por %p107, %p108
    %s111 = sadd.s32 %s110, 1
    %p114 = scmp.eq.s32.totalorder %s13, 1
    %p115 = scmp.ne.s32.totalorder %s110, %s112
    %p116 = scmp.eq.s32.totalorder %s13, 0
    %p117 = por %p115, %p116
    %p118 = scmp.ne.s32.totalorder %s110, %s112
    %p119 = scmp.eq.s32.totalorder %s18, 1
    %p120 = por %p118, %p119
    %p121 = scmp.ne.s32.totalorder %s112, %s113
    %p122 = scmp.eq.s32.totalorder %s18, 0
    %p123 = por %p121, %p122
    %p124 = scmp.ne.s32.totalorder %s112, %s113
    %p125 = scmp.eq.s32.totalorder %s19, 1
    %p126 = por %p124, %p125
    %p128 = scmp.ne.s32.totalorder %s113, %s127
    %p129 = scmp.eq.s32.totalorder %s19, 0
    %p130 = por %p128, %p129
    %s131 = ssub.s32 %s13, %s20
    %p132 = scmp.eq.s32.totalorder %s131, 0
    %s134 = sadd.s32 %s133, 1
    %s135 = scalar_select %p132, %s133, %s134
    %p138 = pneg %p132
    %p139 = scmp.eq.s32.totalorder %s13, 1
    %p140 = por %p138, %p139
    %p141 = scmp.ne.s32.totalorder %s133, %s136
    %p142 = scmp.eq.s32.totalorder %s13, 0
    %p143 = por %p141, %p142
    %p144 = scmp.ne.s32.totalorder %s133, %s136
    %p145 = scmp.eq.s32.totalorder %s18, 1
    %p146 = por %p144, %p145
    %p147 = scmp.ne.s32.totalorder %s136, %s137
    %p148 = scmp.eq.s32.totalorder %s18, 0
    %p149 = por %p147, %p148
    %p150 = scmp.ne.s32.totalorder %s136, %s137
    %p151 = scmp.eq.s32.totalorder %s19, 1
    %p152 = por %p150, %p151
    %p154 = scmp.ne.s32.totalorder %s137, %s153
    %p155 = scmp.eq.s32.totalorder %s19, 0
    %p156 = por %p154, %p155
    %p157 = scmp.le.s32.totalorder 1, %s13
    %p158 = scmp.lt.s32.totalorder %s13, 3
    %p159 = pnand %p157, %p158
    %p160 = pneg %p159
    // Predicated region
    $region9: #{training_module_forward.1} parent=5 // pred_check
      _
    $region10: #{training_module_forward.1} parent=5 // pred_check_branch
      %162 = sbr.rel (%p159) target = $region12
    $region11: #{training_module_forward.1} parent=5 // pred_region
      %s163 = ssub.s32 %s13, 1
      // Predicated region
      $region13: #{training_module_forward.1} parent=11 // pred_check
        %p164 = pneg %p60
      $region14: #{training_module_forward.1} parent=11 // pred_check_branch
        %166 = sbr.rel (%p164) target = $region16
      $region15: #{training_module_forward.1} parent=11 // pred_region
        _
      $region16: #{training_module_forward.1} parent=11 // pred_fallthru
        _
      // Predicated region
      $region17: #{training_module_forward.1} parent=11 // pred_check
        %p167 = pneg %p81
      $region18: #{training_module_forward.1} parent=11 // pred_check_branch
        %169 = sbr.rel (%p167) target = $region20
      $region19: #{training_module_forward.1} parent=11 // pred_region
        _
      $region20: #{training_module_forward.1} parent=11 // pred_fallthru
        _
      // Predicated region
      $region21: #{training_module_forward.1} parent=11 // pred_check
        %p170 = pneg %p102
      $region22: #{training_module_forward.1} parent=11 // pred_check_branch
        %172 = sbr.rel (%p170) target = $region24
      $region23: #{training_module_forward.1} parent=11 // pred_region
        _
      $region24: #{training_module_forward.1} parent=11 // pred_fallthru
        _
      // Predicated region
      $region25: #{training_module_forward.1} parent=11 // pred_check
        %p173 = pneg %p123
      $region26: #{training_module_forward.1} parent=11 // pred_check_branch
        %175 = sbr.rel (%p173) target = $region28
      $region27: #{training_module_forward.1} parent=11 // pred_region
        _
      $region28: #{training_module_forward.1} parent=11 // pred_fallthru
        _
    $region12: #{training_module_forward.1} parent=5 // pred_fallthru
      _
    %p176 = scmp.lt.s32.totalorder %s13, 2
    // Predicated region
    $region29: #{training_module_forward.1} parent=5 // pred_check
      %p177 = pneg %p176
    $region30: #{training_module_forward.1} parent=5 // pred_check_branch
      %179 = sbr.rel (%p177) target = $region32
    $region31: #{training_module_forward.1} parent=5 // pred_region
      // Predicated region
      $region33: #{training_module_forward.1} parent=31 // pred_check
        %p180 = pneg %p33
      $region34: #{training_module_forward.1} parent=31 // pred_check_branch
        %182 = sbr.rel (%p180) target = $region36
      $region35: #{training_module_forward.1} parent=31 // pred_region
        %s183 = smul.u32 8, %s13
        %p184 = scmp.lt.s32.totalorder %s183, 15
        %s185 = scalar_select %p184, %s183, 15
        %s186 = smul.addr %s185, 4
        %s187 = scalar_lea.vmem %s1, %s186
        %s188 = smul.u32 8, %s13
      $region36: #{training_module_forward.1} parent=31 // pred_fallthru
        _
    $region32: #{training_module_forward.1} parent=5 // pred_fallthru
      _
    %p189 = scmp.le.s32.totalorder 1, %s13
    %p190 = scmp.lt.s32.totalorder %s13, 3
    %p191 = pnand %p189, %p190
    %p192 = pneg %p191
    // Predicated region
    $region37: #{training_module_forward.1} parent=5 // pred_check
      _
    $region38: #{training_module_forward.1} parent=5 // pred_check_branch
      %194 = sbr.rel (%p191) target = $region40
    $region39: #{training_module_forward.1} parent=5 // pred_region
      %s195 = ssub.s32 %s13, 1
      %s196 = smul.u32 8, %s18
      %p197 = scmp.lt.s32.totalorder %s196, 15
      %s198 = scalar_select %p197, %s196, 15
      %s199 = smul.addr %s198, 4
      %s200 = scalar_lea.vmem %s1, %s199
      %p201 = pneg %p39
      %p202 = pneg %p36
      %p203 = pneg %p60
      %p204 = pneg %p57
      %p205 = pneg %p81
      %p206 = pneg %p78
      %p207 = pneg %p102
      %p208 = pneg %p99
      %p209 = pneg %p123
      %p210 = pneg %p120
      %p211 = pneg %p149
      %p212 = pneg %p146
      %s213 = smul.u32 8, %s18
      %p214 = scmp.lt.s32.totalorder %s213, 15
      %s215 = scalar_select %p214, %s213, 15
      %s216 = smul.addr %s215, 4
      %s217 = scalar_lea.vmem %s6, %s216
      %s218 = smul.u32 8, %s18
      %p219 = scmp.lt.s32.totalorder %s218, 15
      %s220 = scalar_select %p219, %s218, 15
      %s221 = smul.addr %s220, 4
      %s222 = scalar_lea.vmem %s1, %s221
      %s223 = smul.u32 8, %s18
      %s224 = smul.u32 8, %s18
      %p225 = scmp.lt.s32.totalorder %s224, 15
      %s226 = scalar_select %p225, %s224, 15
      %s227 = smul.addr %s226, 4
      %s228 = scalar_lea.vmem %s6, %s227
      %s229 = smul.u32 8, %s18
      %s231 = sld [smem:[#allocation3]]
      %s232 = smul.u32 %s18, 64
      %v233 = vld [vmem:[%s5] sm:$0x1]
      %v234 = vld [vmem:[%s222] sm:$0xf]
      %v235 = vld [vmem:[%s222 + $0x4] sm:$0xf]
      %v236 = vld [vmem:[%s222 + $0x8] sm:$0xf]
      %v237 = vld [vmem:[%s222 + $0xc] sm:$0xf]
      %v238 = vld [vmem:[%s222 + $0x10] sm:$0xf]
      %v239 = vld [vmem:[%s222 + $0x14] sm:$0xf]
      %v240 = vld [vmem:[%s222 + $0x18] sm:$0xf]
      %v241 = vld [vmem:[%s222 + $0x1c] sm:$0xf]
      %v242 = vld [vmem:[%s2] sm:$0xf]
      %v243 = vld [vmem:[%s2 + $0x4] sm:$0xf]
      %v245 = vperm.slane %v233, 0
      %v255 = vunpack.c.l.b16 %v234
      %v256 = vunpack.c.l.b16 %v235
      %v257 = vunpack.c.l.b16 %v236
      %v258 = vunpack.c.l.b16 %v237
      %v259 = vunpack.c.l.b16 %v238
      %v260 = vunpack.c.l.b16 %v239
      %v261 = vunpack.c.l.b16 %v240
      %v262 = vunpack.c.l.b16 %v241
      %v263 = vpack.c.b16 %v256, %v255
      %v264 = vpack.c.b16 %v258, %v257
      %v265 = vpack.c.b16 %v260, %v259
      %v266 = vpack.c.b16 %v262, %v261
      %v269 = vunpack.c.l.b16 %v242
      %v270 = vunpack.c.l.b16 %v243
      %v271 = vpack.c.b16 %v270, %v269
      %vm273 = vcmask 130048
      %v275 = vsel %vm273, %v263, 0
      %v278 = vsel %vm273, %v264, 0
      %v281 = vsel %vm273, %v265, 0
      %v284 = vsel %vm273, %v266, 0
      %286 = vmatpush.bf16.msra.mxu0 0
      %287 = vmatpush.bf16.msra.mxu0 0
      %288 = vmatpush.bf16.msra.mxu0 0
      %289 = vmatpush.bf16.msra.mxu0 0
      %290 = vmatpush.bf16.msra.mxu0 0
      %291 = vmatpush.bf16.msra.mxu0 0
      %292 = vmatpush.bf16.msra.mxu0 0
      %293 = vmatpush.bf16.msra.mxu0 %v271
      %294 = vmatmul.bf16.gmra.mxu0 %v275
      %v295 = vpop.f32.mrf.mxu0
      %v296 = vadd.f32 %v245, %v295
      %v297 = vpop.f32.mrf.mxu0
      %v298 = vadd.f32 %v245, %v297
      %299 = vmatmul.bf16.gmra.mxu0 %v278
      %v300 = vpop.f32.mrf.mxu0
      %v301 = vadd.f32 %v245, %v300
      %v302 = vpop.f32.mrf.mxu0
      %v303 = vadd.f32 %v245, %v302
      %304 = vmatmul.bf16.gmra.mxu0 %v281
      %v305 = vpop.f32.mrf.mxu0
      %v306 = vadd.f32 %v245, %v305
      %v307 = vpop.f32.mrf.mxu0
      %v308 = vadd.f32 %v245, %v307
      %309 = vmatmul.bf16.gmra.mxu0 %v284
      %v310 = vpop.f32.mrf.mxu0
      %v311 = vadd.f32 %v245, %v310
      %v312 = vpop.f32.mrf.mxu0
      %v313 = vadd.f32 %v245, %v312
      %314 = vdwg.mxu0
      %v315 = vlaneseq
      %v316 = vshrl.u32 %v315, 7
      %v317 = vadd.s32 %v316, 8
      %v318 = vadd.s32 %v316, 16
      %v319 = vadd.s32 %v316, 24
      %v320 = vadd.s32 %v316, 32
      %v321 = vadd.s32 %v316, 40
      %v322 = vadd.s32 %v316, 48
      %v323 = vadd.s32 %v316, 56
      %v324 = vstv %s232
      %v325 = vadd.s32 %v316, %v324
      %v326 = vadd.s32 %v317, %v324
      %v327 = vadd.s32 %v318, %v324
      %v328 = vadd.s32 %v319, %v324
      %v329 = vadd.s32 %v320, %v324
      %v330 = vadd.s32 %v321, %v324
      %v331 = vadd.s32 %v322, %v324
      %v332 = vadd.s32 %v323, %v324
      %v333 = vlaneseq
      %v334 = vand.u32 %v333, 127
      %s335 = sxor.u32 %s231, 439041101
      %v336 = vmul.u32 %v325, 2654435761
      %v337 = vmul.u32 %v326, 2654435761
      %v338 = vmul.u32 %v327, 2654435761
      %v339 = vmul.u32 %v328, 2654435761
      %v340 = vmul.u32 %v329, 2654435761
      %v341 = vmul.u32 %v330, 2654435761
      %v342 = vmul.u32 %v331, 2654435761
      %v343 = vmul.u32 %v332, 2654435761
      %v344 = vstv %s335
      %v345 = vadd.s32 %v344, %v336
      %v346 = vadd.s32 %v344, %v337
      %v347 = vadd.s32 %v344, %v338
      %v348 = vadd.s32 %v344, %v339
      %v349 = vadd.s32 %v344, %v340
      %v350 = vadd.s32 %v344, %v341
      %v351 = vadd.s32 %v344, %v342
      %v352 = vadd.s32 %v344, %v343
      %v353 = vmul.u32 %v334, 2246822519
      %v354 = vadd.s32 %v345, %v353
      %v355 = vadd.s32 %v346, %v353
      %v356 = vadd.s32 %v347, %v353
      %v357 = vadd.s32 %v348, %v353
      %v358 = vadd.s32 %v349, %v353
      %v359 = vadd.s32 %v350, %v353
      %v360 = vadd.s32 %v351, %v353
      %v361 = vadd.s32 %v352, %v353
      %v362 = vshrl.u32 %v354, 16
      %v363 = vshrl.u32 %v355, 16
      %v364 = vshrl.u32 %v356, 16
      %v365 = vshrl.u32 %v357, 16
      %v366 = vshrl.u32 %v358, 16
      %v367 = vshrl.u32 %v359, 16
      %v368 = vshrl.u32 %v360, 16
      %v369 = vshrl.u32 %v361, 16
      %v370 = vxor.u32 %v354, %v362
      %v371 = vxor.u32 %v355, %v363
      %v372 = vxor.u32 %v356, %v364
      %v373 = vxor.u32 %v357, %v365
      %v374 = vxor.u32 %v358, %v366
      %v375 = vxor.u32 %v359, %v367
      %v376 = vxor.u32 %v360, %v368
      %v377 = vxor.u32 %v361, %v369
      %v378 = vmul.u32 %v370, 2146121005
      %v379 = vmul.u32 %v371, 2146121005
      %v380 = vmul.u32 %v372, 2146121005
      %v381 = vmul.u32 %v373, 2146121005
      %v382 = vmul.u32 %v374, 2146121005
      %v383 = vmul.u32 %v375, 2146121005
      %v384 = vmul.u32 %v376, 2146121005
      %v385 = vmul.u32 %v377, 2146121005
      %v386 = vshrl.u32 %v378, 15
      %v387 = vshrl.u32 %v379, 15
      %v388 = vshrl.u32 %v380, 15
      %v389 = vshrl.u32 %v381, 15
      %v390 = vshrl.u32 %v382, 15
      %v391 = vshrl.u32 %v383, 15
      %v392 = vshrl.u32 %v384, 15
      %v393 = vshrl.u32 %v385, 15
      %v394 = vxor.u32 %v378, %v386
      %v395 = vxor.u32 %v379, %v387
      %v396 = vxor.u32 %v380, %v388
      %v397 = vxor.u32 %v381, %v389
      %v398 = vxor.u32 %v382, %v390
      %v399 = vxor.u32 %v383, %v391
      %v400 = vxor.u32 %v384, %v392
      %v401 = vxor.u32 %v385, %v393
      %v402 = vmul.u32 %v394, 2221713035
      %v403 = vmul.u32 %v395, 2221713035
      %v404 = vmul.u32 %v396, 2221713035
      %v405 = vmul.u32 %v397, 2221713035
      %v406 = vmul.u32 %v398, 2221713035
      %v407 = vmul.u32 %v399, 2221713035
      %v408 = vmul.u32 %v400, 2221713035
      %v409 = vmul.u32 %v401, 2221713035
      %v410 = vshrl.u32 %v402, 16
      %v411 = vshrl.u32 %v403, 16
      %v412 = vshrl.u32 %v404, 16
      %v413 = vshrl.u32 %v405, 16
      %v414 = vshrl.u32 %v406, 16
      %v415 = vshrl.u32 %v407, 16
      %v416 = vshrl.u32 %v408, 16
      %v417 = vshrl.u32 %v409, 16
      %v418 = vxor.u32 %v402, %v410
      %v419 = vxor.u32 %v403, %v411
      %v420 = vxor.u32 %v404, %v412
      %v421 = vxor.u32 %v405, %v413
      %v422 = vxor.u32 %v406, %v414
      %v423 = vxor.u32 %v407, %v415
      %v424 = vxor.u32 %v408, %v416
      %v425 = vxor.u32 %v409, %v417
      %v426 = vshrl.u32 %v418, 8
      %v427 = vshrl.u32 %v419, 8
      %v428 = vshrl.u32 %v420, 8
      %v429 = vshrl.u32 %v421, 8
      %v430 = vshrl.u32 %v422, 8
      %v431 = vshrl.u32 %v423, 8
      %v432 = vshrl.u32 %v424, 8
      %v433 = vshrl.u32 %v425, 8
      %v434 = vcvt.s32.f32 %v426
      %v435 = vcvt.s32.f32 %v427
      %v436 = vcvt.s32.f32 %v428
      %v437 = vcvt.s32.f32 %v429
      %v438 = vcvt.s32.f32 %v430
      %v439 = vcvt.s32.f32 %v431
      %v440 = vcvt.s32.f32 %v432
      %v441 = vcvt.s32.f32 %v433
      %v442 = vmul.f32 %v434, 5.9604645e-08
      %v443 = vmul.f32 %v435, 5.9604645e-08
      %v444 = vmul.f32 %v436, 5.9604645e-08
      %v445 = vmul.f32 %v437, 5.9604645e-08
      %v446 = vmul.f32 %v438, 5.9604645e-08
      %v447 = vmul.f32 %v439, 5.9604645e-08
      %v448 = vmul.f32 %v440, 5.9604645e-08
      %v449 = vmul.f32 %v441, 5.9604645e-08
      %v450 = vsub.f32 %v442, 0.5
      %v451 = vsub.f32 %v443, 0.5
      %v452 = vsub.f32 %v444, 0.5
      %v453 = vsub.f32 %v445, 0.5
      %v454 = vsub.f32 %v446, 0.5
      %v455 = vsub.f32 %v447, 0.5
      %v456 = vsub.f32 %v448, 0.5
      %v457 = vsub.f32 %v449, 0.5
      %v458 = vadd.f32 %v296, %v450
      %v459 = vadd.f32 %v298, %v451
      %v460 = vadd.f32 %v301, %v452
      %v461 = vadd.f32 %v303, %v453
      %v462 = vadd.f32 %v306, %v454
      %v463 = vadd.f32 %v308, %v455
      %v464 = vadd.f32 %v311, %v456
      %v465 = vadd.f32 %v313, %v457
      %v466 = vpack.c.bf16 %v298, %v296
      %v467 = vpack.c.bf16 %v303, %v301
      %v468 = vpack.c.bf16 %v308, %v306
      %v469 = vpack.c.bf16 %v313, %v311
      %v470 = vld [vmem:[%s3] sm:$0xf]
      %v471 = vld [vmem:[%s3 + $0x4] sm:$0xf]
      %v472 = vld [vmem:[%s3 + $0x8] sm:$0xf]
      %v473 = vld [vmem:[%s3 + $0xc] sm:$0xf]
      %v478 = vunpack.c.l.b16 %v470
      %v479 = vunpack.c.l.b16 %v471
      %v480 = vunpack.c.l.b16 %v472
      %v481 = vunpack.c.l.b16 %v473
      %v482 = vpack.c.b16 %v479, %v478
      %v483 = vpack.c.b16 %v481, %v480
      %486 = vrot.lane.b32.xlu0 %v245, 96
      %v487 = vpop.permute.xlu0 %486
      %vm489 = vcmask 261120
      %v491 = vsel %vm489, %v466, 0
      %v494 = vsel %vm489, %v467, 0
      %v497 = vsel %vm489, %v468, 0
      %v500 = vsel %vm489, %v469, 0
      %502 = vmatpush.bf16.msra.mxu0 0
      %503 = vmatpush.bf16.msra.mxu0 0
      %504 = vmatpush.bf16.msra.mxu0 0
      %505 = vmatpush.bf16.msra.mxu0 0
      %506 = vmatpush.bf16.msra.mxu0 0
      %507 = vmatpush.bf16.msra.mxu0 0
      %508 = vmatpush.bf16.msra.mxu0 %v483
      %509 = vmatpush.bf16.msra.mxu0 %v482
      %510 = vmatmul.bf16.gmra.mxu0 %v491
      %v511 = vpop.f32.mrf.mxu0
      %v512 = vadd.f32 %v487, %v511
      %v513 = vpop.f32.mrf.mxu0
      %v514 = vadd.f32 %v487, %v513
      %515 = vmatmul.bf16.gmra.mxu0 %v494
      %v516 = vpop.f32.mrf.mxu0
      %v517 = vadd.f32 %v487, %v516
      %v518 = vpop.f32.mrf.mxu0
      %v519 = vadd.f32 %v487, %v518
      %520 = vmatmul.bf16.gmra.mxu0 %v497
      %v521 = vpop.f32.mrf.mxu0
      %v522 = vadd.f32 %v487, %v521
      %v523 = vpop.f32.mrf.mxu0
      %v524 = vadd.f32 %v487, %v523
      %525 = vmatmul.bf16.gmra.mxu0 %v500
      %v526 = vpop.f32.mrf.mxu0
      %v527 = vadd.f32 %v487, %v526
      %v528 = vpop.f32.mrf.mxu0
      %v529 = vadd.f32 %v487, %v528
      %530 = vdwg.mxu0
      %s531 = sxor.u32 %s231, 1584364171
      %v532 = vstv %s531
      %v533 = vadd.s32 %v532, %v336
      %v534 = vadd.s32 %v532, %v337
      %v535 = vadd.s32 %v532, %v338
      %v536 = vadd.s32 %v532, %v339
      %v537 = vadd.s32 %v532, %v340
      %v538 = vadd.s32 %v532, %v341
      %v539 = vadd.s32 %v532, %v342
      %v540 = vadd.s32 %v532, %v343
      %v541 = vadd.s32 %v533, %v353
      %v542 = vadd.s32 %v534, %v353
      %v543 = vadd.s32 %v535, %v353
      %v544 = vadd.s32 %v536, %v353
      %v545 = vadd.s32 %v537, %v353
      %v546 = vadd.s32 %v538, %v353
      %v547 = vadd.s32 %v539, %v353
      %v548 = vadd.s32 %v540, %v353
      %v549 = vshrl.u32 %v541, 16
      %v550 = vshrl.u32 %v542, 16
      %v551 = vshrl.u32 %v543, 16
      %v552 = vshrl.u32 %v544, 16
      %v553 = vshrl.u32 %v545, 16
      %v554 = vshrl.u32 %v546, 16
      %v555 = vshrl.u32 %v547, 16
      %v556 = vshrl.u32 %v548, 16
      %v557 = vxor.u32 %v541, %v549
      %v558 = vxor.u32 %v542, %v550
      %v559 = vxor.u32 %v543, %v551
      %v560 = vxor.u32 %v544, %v552
      %v561 = vxor.u32 %v545, %v553
      %v562 = vxor.u32 %v546, %v554
      %v563 = vxor.u32 %v547, %v555
      %v564 = vxor.u32 %v548, %v556
      %v565 = vmul.u32 %v557, 2146121005
      %v566 = vmul.u32 %v558, 2146121005
      %v567 = vmul.u32 %v559, 2146121005
      %v568 = vmul.u32 %v560, 2146121005
      %v569 = vmul.u32 %v561, 2146121005
      %v570 = vmul.u32 %v562, 2146121005
      %v571 = vmul.u32 %v563, 2146121005
      %v572 = vmul.u32 %v564, 2146121005
      %v573 = vshrl.u32 %v565, 15
      %v574 = vshrl.u32 %v566, 15
      %v575 = vshrl.u32 %v567, 15
      %v576 = vshrl.u32 %v568, 15
      %v577 = vshrl.u32 %v569, 15
      %v578 = vshrl.u32 %v570, 15
      %v579 = vshrl.u32 %v571, 15
      %v580 = vshrl.u32 %v572, 15
      %v581 = vxor.u32 %v565, %v573
      %v582 = vxor.u32 %v566, %v574
      %v583 = vxor.u32 %v567, %v575
      %v584 = vxor.u32 %v568, %v576
      %v585 = vxor.u32 %v569, %v577
      %v586 = vxor.u32 %v570, %v578
      %v587 = vxor.u32 %v571, %v579
      %v588 = vxor.u32 %v572, %v580
      %v589 = vmul.u32 %v581, 2221713035
      %v590 = vmul.u32 %v582, 2221713035
      %v591 = vmul.u32 %v583, 2221713035
      %v592 = vmul.u32 %v584, 2221713035
      %v593 = vmul.u32 %v585, 2221713035
      %v594 = vmul.u32 %v586, 2221713035
      %v595 = vmul.u32 %v587, 2221713035
      %v596 = vmul.u32 %v588, 2221713035
      %v597 = vshrl.u32 %v589, 16
      %v598 = vshrl.u32 %v590, 16
      %v599 = vshrl.u32 %v591, 16
      %v600 = vshrl.u32 %v592, 16
      %v601 = vshrl.u32 %v593, 16
      %v602 = vshrl.u32 %v594, 16
      %v603 = vshrl.u32 %v595, 16
      %v604 = vshrl.u32 %v596, 16
      %v605 = vxor.u32 %v589, %v597
      %v606 = vxor.u32 %v590, %v598
      %v607 = vxor.u32 %v591, %v599
      %v608 = vxor.u32 %v592, %v600
      %v609 = vxor.u32 %v593, %v601
      %v610 = vxor.u32 %v594, %v602
      %v611 = vxor.u32 %v595, %v603
      %v612 = vxor.u32 %v596, %v604
      %v613 = vshrl.u32 %v605, 8
      %v614 = vshrl.u32 %v606, 8
      %v615 = vshrl.u32 %v607, 8
      %v616 = vshrl.u32 %v608, 8
      %v617 = vshrl.u32 %v609, 8
      %v618 = vshrl.u32 %v610, 8
      %v619 = vshrl.u32 %v611, 8
      %v620 = vshrl.u32 %v612, 8
      %v621 = vcvt.s32.f32 %v613
      %v622 = vcvt.s32.f32 %v614
      %v623 = vcvt.s32.f32 %v615
      %v624 = vcvt.s32.f32 %v616
      %v625 = vcvt.s32.f32 %v617
      %v626 = vcvt.s32.f32 %v618
      %v627 = vcvt.s32.f32 %v619
      %v628 = vcvt.s32.f32 %v620
      %v629 = vmul.f32 %v621, 5.9604645e-08
      %v630 = vmul.f32 %v622, 5.9604645e-08
      %v631 = vmul.f32 %v623, 5.9604645e-08
      %v632 = vmul.f32 %v624, 5.9604645e-08
      %v633 = vmul.f32 %v625, 5.9604645e-08
      %v634 = vmul.f32 %v626, 5.9604645e-08
      %v635 = vmul.f32 %v627, 5.9604645e-08
      %v636 = vmul.f32 %v628, 5.9604645e-08
      %v637 = vsub.f32 %v629, 0.5
      %v638 = vsub.f32 %v630, 0.5
      %v639 = vsub.f32 %v631, 0.5
      %v640 = vsub.f32 %v632, 0.5
      %v641 = vsub.f32 %v633, 0.5
      %v642 = vsub.f32 %v634, 0.5
      %v643 = vsub.f32 %v635, 0.5
      %v644 = vsub.f32 %v636, 0.5
      %v645 = vadd.f32 %v512, %v637
      %v646 = vadd.f32 %v514, %v638
      %v647 = vadd.f32 %v517, %v639
      %v648 = vadd.f32 %v519, %v640
      %v649 = vadd.f32 %v522, %v641
      %v650 = vadd.f32 %v524, %v642
      %v651 = vadd.f32 %v527, %v643
      %v652 = vadd.f32 %v529, %v644
      %661 = vrot.lane.b32.xlu0 %v645, 32
      %v662 = vpop.permute.xlu0 %661
      %663 = vrot.lane.b32.xlu0 %v646, 32
      %v664 = vpop.permute.xlu0 %663
      %665 = vrot.lane.b32.xlu0 %v647, 32
      %v666 = vpop.permute.xlu0 %665
      %667 = vrot.lane.b32.xlu0 %v648, 32
      %v668 = vpop.permute.xlu0 %667
      %669 = vrot.lane.b32.xlu0 %v649, 32
      %v670 = vpop.permute.xlu0 %669
      %671 = vrot.lane.b32.xlu0 %v650, 32
      %v672 = vpop.permute.xlu0 %671
      %673 = vrot.lane.b32.xlu0 %v651, 32
      %v674 = vpop.permute.xlu0 %673
      %675 = vrot.lane.b32.xlu0 %v652, 32
      %v676 = vpop.permute.xlu0 %675
      %v685 = vsel %vm489, %v458, %v662
      %v686 = vsel %vm489, %v459, %v664
      %v687 = vsel %vm489, %v460, %v666
      %v688 = vsel %vm489, %v461, %v668
      %v689 = vsel %vm489, %v462, %v670
      %v690 = vsel %vm489, %v463, %v672
      %v691 = vsel %vm489, %v464, %v674
      %v692 = vsel %vm489, %v465, %v676
      %v693 = vpack.c.bf16 %v686, %v685
      %v694 = vpack.c.bf16 %v688, %v687
      %v695 = vpack.c.bf16 %v690, %v689
      %v696 = vpack.c.bf16 %v692, %v691
      %v697 = vld [vmem:[%s4] sm:$0xf]
      %v698 = vld [vmem:[%s4 + $0x4] sm:$0xf]
      %v699 = vld [vmem:[%s4 + $0x8] sm:$0xf]
      %v700 = vld [vmem:[%s4 + $0xc] sm:$0xf]
      %v701 = vld [vmem:[%s4 + $0x10] sm:$0xf]
      %v702 = vld [vmem:[%s4 + $0x14] sm:$0xf]
      %v709 = vunpack.c.l.b16 %v697
      %v710 = vunpack.c.l.b16 %v698
      %v711 = vunpack.c.l.b16 %v699
      %v712 = vunpack.c.l.b16 %v700
      %v713 = vunpack.c.l.b16 %v701
      %v714 = vunpack.c.l.b16 %v702
      %v715 = vpack.c.b16 %v710, %v709
      %v716 = vpack.c.b16 %v712, %v711
      %v717 = vpack.c.b16 %v714, %v713
      %721 = vrot.lane.b32.xlu0 %v245, 80
      %v722 = vpop.permute.xlu0 %721
      %vm724 = vcmask 392192
      %v726 = vsel %vm724, %v693, 0
      %v729 = vsel %vm724, %v694, 0
      %v732 = vsel %vm724, %v695, 0
      %v735 = vsel %vm724, %v696, 0
      %737 = vmatpush.bf16.msra.mxu0 0
      %738 = vmatpush.bf16.msra.mxu0 0
      %739 = vmatpush.bf16.msra.mxu0 0
      %740 = vmatpush.bf16.msra.mxu0 0
      %741 = vmatpush.bf16.msra.mxu0 0
      %742 = vmatpush.bf16.msra.mxu0 %v717
      %743 = vmatpush.bf16.msra.mxu0 %v716
      %744 = vmatpush.bf16.msra.mxu0 %v715
      %745 = vmatmul.bf16.gmra.mxu0 %v726
      %v746 = vpop.f32.mrf.mxu0
      %v747 = vadd.f32 %v722, %v746
      %v748 = vpop.f32.mrf.mxu0
      %v749 = vadd.f32 %v722, %v748
      %750 = vmatmul.bf16.gmra.mxu0 %v729
      %v751 = vpop.f32.mrf.mxu0
      %v752 = vadd.f32 %v722, %v751
      %v753 = vpop.f32.mrf.mxu0
      %v754 = vadd.f32 %v722, %v753
      %755 = vmatmul.bf16.gmra.mxu0 %v732
      %v756 = vpop.f32.mrf.mxu0
      %v757 = vadd.f32 %v722, %v756
      %v758 = vpop.f32.mrf.mxu0
      %v759 = vadd.f32 %v722, %v758
      %760 = vmatmul.bf16.gmra.mxu0 %v735
      %v761 = vpop.f32.mrf.mxu0
      %v762 = vadd.f32 %v722, %v761
      %v763 = vpop.f32.mrf.mxu0
      %v764 = vadd.f32 %v722, %v763
      %765 = vdwg.mxu0
      %v766 = vmax.f32 %v747, 0.0
      %v767 = vmax.f32 %v749, 0.0
      %v768 = vmax.f32 %v752, 0.0
      %v769 = vmax.f32 %v754, 0.0
      %v770 = vmax.f32 %v757, 0.0
      %v771 = vmax.f32 %v759, 0.0
      %v772 = vmax.f32 %v762, 0.0
      %v773 = vmax.f32 %v764, 0.0
      %v774 = vand.u32 2147483647, %v747
      %v775 = vand.u32 2147483647, %v749
      %v776 = vand.u32 2147483647, %v752
      %v777 = vand.u32 2147483647, %v754
      %v778 = vand.u32 2147483647, %v757
      %v779 = vand.u32 2147483647, %v759
      %v780 = vand.u32 2147483647, %v762
      %v781 = vand.u32 2147483647, %v764
      %v782 = vsub.f32 0.0, %v774
      %v783 = vsub.f32 0.0, %v775
      %v784 = vsub.f32 0.0, %v776
      %v785 = vsub.f32 0.0, %v777
      %v786 = vsub.f32 0.0, %v778
      %v787 = vsub.f32 0.0, %v779
      %v788 = vsub.f32 0.0, %v780
      %v789 = vsub.f32 0.0, %v781
      %v790 = vmul.f32 %v782, 1.442695
      %v791 = vpow.pop %v790
      %v792 = vmul.f32 %v783, 1.442695
      %v793 = vpow.pop %v792
      %v794 = vmul.f32 %v784, 1.442695
      %v795 = vpow.pop %v794
      %v796 = vmul.f32 %v785, 1.442695
      %v797 = vpow.pop %v796
      %v798 = vmul.f32 %v786, 1.442695
      %v799 = vpow.pop %v798
      %v800 = vmul.f32 %v787, 1.442695
      %v801 = vpow.pop %v800
      %v802 = vmul.f32 %v788, 1.442695
      %v803 = vpow.pop %v802
      %v804 = vmul.f32 %v789, 1.442695
      %v805 = vpow.pop %v804
      %v806 = vadd.f32 %v791, 1.0
      %v807 = vadd.f32 %v793, 1.0
      %v808 = vadd.f32 %v795, 1.0
      %v809 = vadd.f32 %v797, 1.0
      %v810 = vadd.f32 %v799, 1.0
      %v811 = vadd.f32 %v801, 1.0
      %v812 = vadd.f32 %v803, 1.0
      %v813 = vadd.f32 %v805, 1.0
      %v814 = vlog2.pop %v806
      %v815 = vmul.f32 %v814, 0.6931472
      %v816 = vlog2.pop %v807
      %v817 = vmul.f32 %v816, 0.6931472
      %v818 = vlog2.pop %v808
      %v819 = vmul.f32 %v818, 0.6931472
      %v820 = vlog2.pop %v809
      %v821 = vmul.f32 %v820, 0.6931472
      %v822 = vlog2.pop %v810
      %v823 = vmul.f32 %v822, 0.6931472
      %v824 = vlog2.pop %v811
      %v825 = vmul.f32 %v824, 0.6931472
      %v826 = vlog2.pop %v812
      %v827 = vmul.f32 %v826, 0.6931472
      %v828 = vlog2.pop %v813
      %v829 = vmul.f32 %v828, 0.6931472
      %v830 = vadd.f32 %v766, %v815
      %v831 = vadd.f32 %v767, %v817
      %v832 = vadd.f32 %v768, %v819
      %v833 = vadd.f32 %v769, %v821
      %v834 = vadd.f32 %v770, %v823
      %v835 = vadd.f32 %v771, %v825
      %v836 = vadd.f32 %v772, %v827
      %v837 = vadd.f32 %v773, %v829
      %v838 = vadd.f32 %v830, 1e-06
      %v839 = vadd.f32 %v831, 1e-06
      %v840 = vadd.f32 %v832, 1e-06
      %v841 = vadd.f32 %v833, 1e-06
      %v842 = vadd.f32 %v834, 1e-06
      %v843 = vadd.f32 %v835, 1e-06
      %v844 = vadd.f32 %v836, 1e-06
      %v845 = vadd.f32 %v837, 1e-06
      %854 = vrot.lane.b32.xlu0 %v747, 48
      %v855 = vpop.permute.xlu0 %854
      %856 = vrot.lane.b32.xlu0 %v749, 48
      %v857 = vpop.permute.xlu0 %856
      %858 = vrot.lane.b32.xlu0 %v752, 48
      %v859 = vpop.permute.xlu0 %858
      %860 = vrot.lane.b32.xlu0 %v754, 48
      %v861 = vpop.permute.xlu0 %860
      %862 = vrot.lane.b32.xlu0 %v757, 48
      %v863 = vpop.permute.xlu0 %862
      %864 = vrot.lane.b32.xlu0 %v759, 48
      %v865 = vpop.permute.xlu0 %864
      %866 = vrot.lane.b32.xlu0 %v762, 48
      %v867 = vpop.permute.xlu0 %866
      %868 = vrot.lane.b32.xlu0 %v764, 48
      %v869 = vpop.permute.xlu0 %868
      %886 = vrot.lane.b32.xlu0 %v838, 48
      %v887 = vpop.permute.xlu0 %886
      %888 = vrot.lane.b32.xlu0 %v839, 48
      %v889 = vpop.permute.xlu0 %888
      %890 = vrot.lane.b32.xlu0 %v840, 48
      %v891 = vpop.permute.xlu0 %890
      %892 = vrot.lane.b32.xlu0 %v841, 48
      %v893 = vpop.permute.xlu0 %892
      %894 = vrot.lane.b32.xlu0 %v842, 48
      %v895 = vpop.permute.xlu0 %894
      %896 = vrot.lane.b32.xlu0 %v843, 48
      %v897 = vpop.permute.xlu0 %896
      %898 = vrot.lane.b32.xlu0 %v844, 48
      %v899 = vpop.permute.xlu0 %898
      %900 = vrot.lane.b32.xlu0 %v845, 48
      %v901 = vpop.permute.xlu0 %900
      %v910 = vsel %vm724, %v685, %v855
      %v911 = vsel %vm724, %v686, %v857
      %v912 = vsel %vm724, %v687, %v859
      %v913 = vsel %vm724, %v688, %v861
      %v914 = vsel %vm724, %v689, %v863
      %v915 = vsel %vm724, %v690, %v865
      %v916 = vsel %vm724, %v691, %v867
      %v917 = vsel %vm724, %v692, %v869
      %vm918 = vcmask 785408
      %v919 = vsel %vm918, %v910, %v887
      %v920 = vsel %vm918, %v911, %v889
      %v921 = vsel %vm918, %v912, %v891
      %v922 = vsel %vm918, %v913, %v893
      %v923 = vsel %vm918, %v914, %v895
      %v924 = vsel %vm918, %v915, %v897
      %v925 = vsel %vm918, %v916, %v899
      %v926 = vsel %vm918, %v917, %v901
      %v927 = vpack.c.bf16 %v919, %v919
      %v928 = vpack.c.bf16 %v920, %v920
      %v929 = vpack.c.bf16 %v921, %v921
      %v930 = vpack.c.bf16 %v922, %v922
      %v931 = vpack.c.bf16 %v923, %v923
      %v932 = vpack.c.bf16 %v924, %v924
      %v933 = vpack.c.bf16 %v925, %v925
      %v934 = vpack.c.bf16 %v926, %v926
      %935 = vst [vmem:[%s228] sm:$0xf] %v927
      %936 = vst [vmem:[%s228 + $0x4] sm:$0xf] %v928
      %937 = vst [vmem:[%s228 + $0x8] sm:$0xf] %v929
      %938 = vst [vmem:[%s228 + $0xc] sm:$0xf] %v930
      %939 = vst [vmem:[%s228 + $0x10] sm:$0xf] %v931
      %940 = vst [vmem:[%s228 + $0x14] sm:$0xf] %v932
      %941 = vst [vmem:[%s228 + $0x18] sm:$0xf] %v933
      %942 = vst [vmem:[%s228 + $0x1c] sm:$0xf] %v934
      %s943 = smul.u32 8, %s18
      %p944 = scmp.lt.s32.totalorder %s943, 15
      %s945 = scalar_select %p944, %s943, 15
      %s946 = smul.addr %s945, 4
      %s947 = scalar_lea.vmem %s6, %s946
      // Predicated region
      $region41: #{training_module_forward.1} parent=39 // pred_check
        %p948 = pneg %p146
      $region42: #{training_module_forward.1} parent=39 // pred_check_branch
        %950 = sbr.rel (%p948) target = $region44
      $region43: #{training_module_forward.1} parent=39 // pred_region
        %s951 = smul.u32 8, %s18
      $region44: #{training_module_forward.1} parent=39 // pred_fallthru
        _
    $region40: #{training_module_forward.1} parent=5 // pred_fallthru
      _
    %p952 = scmp.le.s32.totalorder 2, %s13
    // Predicated region
    $region45: #{training_module_forward.1} parent=5 // pred_check
      %p953 = pneg %p952
    $region46: #{training_module_forward.1} parent=5 // pred_check_branch
      %955 = sbr.rel (%p953) target = $region48
    $region47: #{training_module_forward.1} parent=5 // pred_region
      %s956 = ssub.s32 %s13, 2
      // Predicated region
      $region49: #{training_module_forward.1} parent=47 // pred_check
        %p957 = pneg %p152
      $region50: #{training_module_forward.1} parent=47 // pred_check_branch
        %959 = sbr.rel (%p957) target = $region52
      $region51: #{training_module_forward.1} parent=47 // pred_region
        %s960 = smul.u32 8, %s19
        %p961 = scmp.lt.s32.totalorder %s960, 15
        %s962 = scalar_select %p961, %s960, 15
        %s963 = smul.addr %s962, 4
        %s964 = scalar_lea.vmem %s6, %s963
      $region52: #{training_module_forward.1} parent=47 // pred_fallthru
        _
    $region48: #{training_module_forward.1} parent=5 // pred_fallthru
      _
  $region6: #{training_module_forward.1} parent=0 // loop_footer
    %s17 = sadd.s32 1, %s13
  $region7: #{training_module_forward.1} parent=0 // loop_footer_branch
    %12 = sbr.rel target = $region3
  $region8: #{training_module_forward.1} parent=0 // loop_exit
    _

</llo_original>
